<compile_context>
chip_gen: v6e
topology: v6e:2x2x1
jax: 0.10.0
libtpu: 0.0.40
codegen_flags: <defaults>
</compile_context>

<pallas_src>
import jax
import jax.numpy as jnp
from jax.experimental import pallas as pl
from jax.experimental.pallas import tpu as pltpu


def _choose_fold_width(B, N, max_width=2048):
    """Fold width W for the (B, 2T) -> (R, W) sublane-densifying reshape.

    W must be a (necessarily even) multiple of 128 dividing N so that lane
    parity == class parity is preserved.  Prefer the widest W for which
    R = B*N/W is a multiple of 8 (full sublane occupancy); otherwise the
    narrowest legal W (maximizes row count); otherwise no fold (None)."""
    if N % 128 != 0:
        return None
    cands = [w for w in range(128, min(N, max_width) + 1, 128) if N % w == 0]
    if not cands:
        return None
    good = [w for w in cands if (B * (N // w)) % 8 == 0]
    return max(good) if good else min(cands)


def _choose_row_block(R, W, target_bytes):
    """Largest multiple-of-8 divisor of R whose (rows, W) f32 tile fits
    target_bytes; falls back to the smallest multiple-of-8 divisor, then to
    the full extent (always BlockSpec-legal)."""
    bytes_per_row = 4 * W
    cap = min(R, max(1, target_bytes // bytes_per_row))
    best = None
    for d in range(8, cap + 1, 8):
        if R % d == 0:
            best = d
    if best is not None:
        return best
    for d in range(8, R + 1, 8):
        if R % d == 0:
            return d
    # TODO(synk): a pathological R (no multiple-of-8 divisor) combined with a
    # huge W would make this single full-extent tile large; pad rows in the
    # wrapper if that ever matters in practice.
    return R


def _make_loss_kernel(b_block, W, lane_w, row_fold):
    n_lane_tiles = W // lane_w
    n_row_tiles = b_block // 8 if row_fold else 1

    def kernel(x_ref, lab_ref, out_ref):
        x = x_ref[...].astype(jnp.float32)                    # (b_block, W)

        # ---- label-free term: 0.5*|x| + log1p(exp(-|x|))  (VPU + EUP) ----
        ax = jnp.abs(x)
        t = 0.5 * ax + jnp.log1p(jnp.exp(-ax))
        if n_row_tiles > 1:
            # free reshape (splits the sublane-tile axis); pure VPU slab adds
            t = t.reshape(n_row_tiles, 8, W).sum(axis=0)      # (8, W)
        main_sum = jnp.sum(t)                                  # small XLU reduce

        # ---- linear term: fold lane-tiles of x; sign applied at finalize ----
        # lane_w is even, so lane parity == class parity in every lane tile.
        lin = x[:, 0:lane_w]
        for j in range(1, n_lane_tiles):
            lin = lin + x[:, j * lane_w:(j + 1) * lane_w]      # (b_block, lane_w)
        lane_idx = jax.lax.broadcasted_iota(jnp.int32, (1, lane_w), 1)
        alt = jnp.where((lane_idx & 1) == 0, jnp.float32(-1.0), jnp.float32(1.0))
        lab = lab_ref[...].astype(jnp.float32)                 # (b_block, 1), ±1
        lin_sum = jnp.sum((lab * lin) * alt)

        # sum of logsigmoid(label_all * logits) over this tile
        out_ref[0, 0] = 0.5 * lin_sum - main_sum

    return kernel


def loss_sigmoid(logits, labells, *, target_block_bytes=4 << 20,
                 max_fold_width=2048):
    """Pallas implementation of Loss_detection.forward
    (loss_type='sigmoid', dec_type='mean').  Accepts f32 or bf16 logits;
    labells are hard {0, 1} labels (as the module uses them)."""
    B, T, C = logits.shape
    assert C == 2, "class dimension must be 2"
    N = 2 * T

    # sublane-densifying fold: (B, T, 2) -> (R, W), contiguous (free) reshape
    W = _choose_fold_width(B, N, max_fold_width)
    if W is None:
        W, rows_per_b = N, 1
    else:
        rows_per_b = N // W
    R = B * rows_per_b

    x2d = logits.reshape(R, W)
    labels_pm = 2.0 * labells.astype(jnp.float32) - 1.0        # (B,), ±1
    lab_rows = jnp.repeat(labels_pm, rows_per_b).reshape(R, 1)  # (R, 1), tiny

    b_block = _choose_row_block(R, W, target_block_bytes)
    nb = R // b_block
    lane_w = 128 if W % 128 == 0 else W
    row_fold = (b_block % 8 == 0)

    kernel = _make_loss_kernel(b_block, W, lane_w, row_fold)

    partials = pl.pallas_call(
        kernel,
        out_shape=jax.ShapeDtypeStruct((nb, 1), jnp.float32),
        grid_spec=pltpu.PrefetchScalarGridSpec(
            num_scalar_prefetch=0,
            grid=(nb,),
            in_specs=[
                # fully contiguous ~target_block_bytes row tile, double-buffered
                # TODO(synk): if xprof on v7x shows exposed DMA, add
                # pipeline_mode=pl.Buffered(3) on this spec only.
                pl.BlockSpec((b_block, W), lambda i: (i, 0)),
                # per-row ±1 label column (tiny)
                pl.BlockSpec((b_block, 1), lambda i: (i, 0)),
            ],
            out_specs=pl.BlockSpec(
                (1, 1), lambda i: (i, 0),
                memory_space=pltpu.MemorySpace.SMEM,
            ),
        ),
        compiler_params=pltpu.CompilerParams(
            # every row tile is independent -> megacore sharding on v7x;
            # 2 x ~4 MiB double-buffered input stays well inside every
            # generation's scoped-VMEM default (16/32/32 MiB).
            dimension_semantics=("parallel",),
        ),
    )(x2d, lab_rows)

    # loss = -mean_b( sum_c( mean_t(...) ) ) = -(sum of everything) / (B*T)
    return -jnp.sum(partials) / jnp.float32(B * T)


def loss_detection_ref(logits, labells):
    """Pure-JAX reference mirroring Loss_detection.forward
    (loss_type='sigmoid', dec_type='mean')."""
    labels = (2.0 * labells - 1.0)[:, None]                      # (B, 1)
    label_all = jnp.concatenate([-labels, labels], axis=1)       # (B, 2)
    input_sig = label_all[:, None, :] * logits                   # (B, T, 2)
    loss_each = jax.nn.log_sigmoid(input_sig)
    dec_each_in = jnp.mean(loss_each, axis=1)                    # dec = mean over time
    # TODO(synk): dec_type='max'/'both', loss_type='softmax'/'both',
    # validation()/sync_AS() and the torch.isnan host-side debug prints are
    # not reproduced.
    return -jnp.mean(jnp.sum(dec_each_in, axis=-1))


if __name__ == "__main__":
    key = jax.random.PRNGKey(0)
    ks = jax.random.split(key, 6)

    # case 1: tiny shape -> no-fold fallback path (full-extent blocks)
    B, T = 2, 8
    logits = jax.random.normal(ks[0], (B, T, 2), dtype=jnp.float32)
    labells = (jax.random.uniform(ks[1], (B,)) > 0.5).astype(jnp.float32)
    out = jax.block_until_ready(loss_sigmoid(logits, labells))
    ref = loss_detection_ref(logits, labells)
    assert jnp.allclose(out, ref, atol=1e-5, rtol=1e-5), (out, ref)

    # case 2: small batch, longer sequence -> time folded into the sublane axis
    B2, T2 = 2, 512
    logits2 = jax.random.normal(ks[2], (B2, T2, 2), dtype=jnp.float32)
    labells2 = (jax.random.uniform(ks[3], (B2,)) > 0.5).astype(jnp.float32)
    out2 = jax.block_until_ready(loss_sigmoid(logits2, labells2))
    ref2 = loss_detection_ref(logits2, labells2)
    assert jnp.allclose(out2, ref2, atol=1e-5, rtol=1e-5), (out2, ref2)

    # case 3: bf16 logits, small block budget -> multi-tile "parallel" grid,
    # in-kernel row-tile fold (b_block=16) and lane-tile fold exercised
    B3, T3 = 32, 256
    logits3 = jax.random.normal(ks[4], (B3, T3, 2), dtype=jnp.bfloat16)
    labells3 = (jax.random.uniform(ks[5], (B3,)) > 0.5).astype(jnp.float32)
    out3 = jax.block_until_ready(
        loss_sigmoid(logits3, labells3, target_block_bytes=32 * 1024))
    ref3 = loss_detection_ref(logits3.astype(jnp.float32), labells3)
    assert jnp.allclose(out3, ref3, atol=1e-4, rtol=1e-4), (out3, ref3)

    print("KERNEL_OK")
</pallas_src>

<mosaic_0001>
module attributes {stable_mosaic.version = 11 : i64} {
  func.func @kernel(%arg0: i32, %arg1: memref<2x16xf32, #tpu.memory_space<vmem>>, %arg2: memref<2x1xf32, #tpu.memory_space<vmem>>, %arg3: memref<1x1xf32, #tpu.memory_space<smem>>) attributes {dimension_semantics = [#tpu.dimension_semantics<parallel>], iteration_bounds = array<i64: 1>, scalar_prefetch = 0 : i64, scratch_operands = 0 : i64, tpu.core_type = #tpu.core_type<tc>, window_params = [{transform_indices = @transform_0, window_bounds = array<i64: 2, 16>}, {transform_indices = @transform_1, window_bounds = array<i64: 2, 1>}, {transform_indices = @transform_2, window_bounds = array<i64: 1, 1>}]} {
    %c0 = arith.constant 0 : index
    %c0_0 = arith.constant 0 : index
    %0 = vector.load %arg1[%c0, %c0_0] : memref<2x16xf32, #tpu.memory_space<vmem>>, vector<2x16xf32>
    %1 = math.absf %0 : vector<2x16xf32>
    %cst = arith.constant 5.000000e-01 : f32
    %2 = vector.broadcast %cst : f32 to vector<2x16xf32>
    %3 = arith.mulf %2, %1 : vector<2x16xf32>
    %cst_1 = arith.constant 0.000000e+00 : f32
    %4 = vector.broadcast %cst_1 : f32 to vector<2x16xf32>
    %5 = arith.subf %4, %1 : vector<2x16xf32>
    %6 = math.exp %5 : vector<2x16xf32>
    %7 = math.log1p %6 : vector<2x16xf32>
    %8 = arith.addf %3, %7 : vector<2x16xf32>
    %9 = vector.shape_cast %8 : vector<2x16xf32> to vector<1x2x16xf32>
    %cst_2 = arith.constant dense<0.000000e+00> : vector<1xf32>
    %10 = vector.multi_reduction <add>, %9, %cst_2 [1, 2] : vector<1x2x16xf32> to vector<1xf32>
    %11 = vector.shape_cast %10 : vector<1xf32> to vector<1x1x1xf32>
    %12 = vector.extract %11[0, 0, 0] : f32 from vector<1x1x1xf32>
    %13 = tpu.iota {dimensions = array<i32: 1>} : vector<1x16xi32>
    %c1_i32 = arith.constant 1 : i32
    %14 = vector.broadcast %c1_i32 : i32 to vector<1x16xi32>
    %15 = arith.andi %13, %14 : vector<1x16xi32>
    %c0_i32 = arith.constant 0 : i32
    %16 = vector.broadcast %c0_i32 : i32 to vector<1x16xi32>
    %17 = arith.cmpi eq, %15, %16 : vector<1x16xi32>
    %cst_3 = arith.constant -1.000000e+00 : f32
    %cst_4 = arith.constant 1.000000e+00 : f32
    %18 = vector.broadcast %cst_3 : f32 to vector<1x16xf32>
    %19 = vector.broadcast %cst_4 : f32 to vector<1x16xf32>
    %20 = arith.select %17, %18, %19 : vector<1x16xi1>, vector<1x16xf32>
    %c0_5 = arith.constant 0 : index
    %c0_6 = arith.constant 0 : index
    %21 = vector.load %arg2[%c0_5, %c0_6] : memref<2x1xf32, #tpu.memory_space<vmem>>, vector<2x1xf32>
    %22 = vector.broadcast %21 : vector<2x1xf32> to vector<2x16xf32>
    %23 = arith.mulf %22, %0 : vector<2x16xf32>
    %24 = vector.broadcast %20 : vector<1x16xf32> to vector<2x16xf32>
    %25 = arith.mulf %23, %24 : vector<2x16xf32>
    %26 = vector.shape_cast %25 : vector<2x16xf32> to vector<1x2x16xf32>
    %cst_7 = arith.constant dense<0.000000e+00> : vector<1xf32>
    %27 = vector.multi_reduction <add>, %26, %cst_7 [1, 2] : vector<1x2x16xf32> to vector<1xf32>
    %28 = vector.shape_cast %27 : vector<1xf32> to vector<1x1x1xf32>
    %29 = vector.extract %28[0, 0, 0] : f32 from vector<1x1x1xf32>
    %cst_8 = arith.constant 5.000000e-01 : f32
    %30 = arith.mulf %cst_8, %29 : f32
    %31 = arith.subf %30, %12 : f32
    %c0_9 = arith.constant 0 : index
    %c0_10 = arith.constant 0 : index
    %32 = memref.load %arg3[%c0_9, %c0_10] : memref<1x1xf32, #tpu.memory_space<smem>>
    memref.store %31, %arg3[%c0_9, %c0_10] : memref<1x1xf32, #tpu.memory_space<smem>>
    return
  }
  func.func @transform_0(%arg0: i32) -> (i32, i32) {
    %c0_i32 = arith.constant 0 : i32
    %c0_i32_0 = arith.constant 0 : i32
    return %arg0, %c0_i32 : i32, i32
  }
  func.func @transform_1(%arg0: i32) -> (i32, i32) {
    %c0_i32 = arith.constant 0 : i32
    %c0_i32_0 = arith.constant 0 : i32
    return %arg0, %c0_i32 : i32, i32
  }
  func.func @transform_2(%arg0: i32) -> (i32, i32) {
    %c0_i32 = arith.constant 0 : i32
    %c0_i32_0 = arith.constant 0 : i32
    return %arg0, %c0_i32 : i32, i32
  }
}

</mosaic_0001>

<llo_original>
// kernel: tpu_custom_call.1
$region0: #{tpu_custom_call.1}
  #allocation0 [shape = 'u32[]', space=smem, size = 0x4, offset = 0x4, fixed_abs, tag = 'smem constant byte address 0x4 - core index']
  #allocation1 [shape = 'u32[144,128]{1,0:T(1,128)}', space=vmem, size = 0x12000, scoped, tag = 'internal scratch']
  %s0 = inlined_call_operand.vmem [shape: f32[2,16], index: 0, kind: input, shape index: {}]
  %s1 = inlined_call_operand.vmem [shape: f32[2,1], index: 1, kind: input, shape index: {}]
  %s2 = inlined_call_operand.hbm [shape: f32[1,1], index: 2, kind: output, shape index: {}]
  %s3 = sld [smem:[#allocation0]]
  $region18: #{tpu_custom_call.1} parent=0
    _
  %s5 = ssub.s32 1, %s3
  %s6 = scalar_select 0, %s5, %s3
  $region1: #{tpu_custom_call.1} parent=0
    #allocation2 [shape = 'u8[512]{0}', space=smem, size = 0x200, scoped, tag = 'output window, operand 0, single buffered']
    #allocation3 [shape = 's32[1]{0}', space=sflag, size = 0x4, scoped, tag = 'scoped memory for tpu_custom_call.1']
    %7 = vsyncpa [#allocation3], 0
    // Predicated region
    $region2: #{tpu_custom_call.1} parent=1 // pred_check
      _
    $region3: #{tpu_custom_call.1} parent=1 // pred_check_branch
      %9 = sbr.rel (0) target = $region5
    $region4: #{tpu_custom_call.1} parent=1 // pred_region
      _
    $region5: #{tpu_custom_call.1} parent=1 // pred_fallthru
      _
    // Predicated region
    $region6: #{tpu_custom_call.1} parent=1 // pred_check
      _
    $region7: #{tpu_custom_call.1} parent=1 // pred_check_branch
      %11 = sbr.rel (0) target = $region9
    $region8: #{tpu_custom_call.1} parent=1 // pred_region
      _
    $region9: #{tpu_custom_call.1} parent=1 // pred_fallthru
      _
    %v12 = vld [vmem:[%s0] sm:$0x3]
    %v13 = vand.u32 2147483647, %v12
    %v14 = vmul.f32 %v13, 0.5
    %v15 = vsub.f32 0.0, %v13
    %v16 = vmul.f32 %v15, 1.442695
    %v17 = vpow.pop %v16
    %v18 = vadd.f32 %v17, 1.0
    %v19 = vlog2.pop %v18
    %v20 = vmul.f32 %v19, 0.6931472
    %v21 = vmul.f32 -0.5, %v17
    %v22 = vadd.f32 %v21, 1.0
    %v23 = vmul.f32 %v22, %v17
    %v24 = vand.u32 2147483647, %v17
    %vm25 = vcmp.lt.f32.partialorder %v24, 0.0004427343
    %v26 = vsel %vm25, %v23, %v20
    %v27 = vadd.f32 %v14, %v26
    %vm28 = vcmask 123904
    %v29 = vsel %vm28, %v27, 0.0
    %30 = vadd.xlane.f32.xlu0 %v29
    %v31 = vpop.xlane.xlu0 %30
    %v32 = vrot.slane %v31, 4
    %v33 = vadd.f32 %v31, %v32
    %v34 = vrot.slane %v33, 2
    %v35 = vadd.f32 %v33, %v34
    %v36 = vrot.slane %v35, 1
    %v37 = vadd.f32 %v35, %v36
    %s38 = vtos %v37
    %v39 = vlaneseq
    %v40 = vand.u32 %v39, 127
    %v41 = vand.u32 %v40, 1
    %vm42 = vcmp.eq.s32.totalorder %v41, 0
    %v43 = vsel %vm42, -1.0, 1.0
    %v44 = vld [vmem:[%s1] sm:$0x3]
    %46 = vset.pattern.permute.xlu0 0
    %47 = vperm.xlu0 %46, %v44
    %v48 = vpop.permute.xlu0 %47
    %v50 = vmul.f32 %v48, %v12
    %v51 = vmul.f32 %v50, %v43
    %v52 = vsel %vm28, %v51, 0.0
    %53 = vadd.xlane.f32.xlu0 %v52
    %v54 = vpop.xlane.xlu0 %53
    %v55 = vrot.slane %v54, 4
    %v56 = vadd.f32 %v54, %v55
    %v57 = vrot.slane %v56, 2
    %v58 = vadd.f32 %v56, %v57
    %v59 = vrot.slane %v58, 1
    %v60 = vadd.f32 %v58, %v59
    %s61 = vtos %v60
    %s62 = smul.f32 %s61, 0.5
    %s63 = ssub.f32 %s62, %s38
    %s64 = scalar_lea.smem [#allocation2], 0
    %65 = sst [smem:[%s64]] %s63
    // Predicated region
    $region10: #{tpu_custom_call.1} parent=1 // pred_check
      _
    $region11: #{tpu_custom_call.1} parent=1 // pred_check_branch
      %67 = sbr.rel (0) target = $region13
    $region12: #{tpu_custom_call.1} parent=1 // pred_region
      %s69 = ssub.s32 16, 16
      %70 = vsyncadd [#allocation3], %s69
      %73 = dma.smem_to_hbm [#allocation2], 16, %s2, [#allocation3]
    $region13: #{tpu_custom_call.1} parent=1 // pred_fallthru
      _
    // Predicated region
    $region14: #{tpu_custom_call.1} parent=1 // pred_check
      _
    $region15: #{tpu_custom_call.1} parent=1 // pred_check_branch
      %75 = sbr.rel (0) target = $region17
    $region16: #{tpu_custom_call.1} parent=1 // pred_region
      %76 = dma.done [#allocation3], 16
    $region17: #{tpu_custom_call.1} parent=1 // pred_fallthru
      _
    %77 = sfence
    %78 = vsyncpa [#allocation3], 1

</llo_original>
